<compile_context>
chip_gen: v6e
topology: v6e:2x2x1
jax: 0.10.0
libtpu: 0.0.40
codegen_flags: <defaults>
</compile_context>

<pallas_src>
import functools

import jax
import jax.numpy as jnp
from jax.experimental import pallas as pl
from jax.experimental.pallas import tpu as pltpu


def _siamese_loss_kernel(logits_ref, tgt_ref, anc_ref, pos_ref, neg_ref,
                         out_ref, acc_ref,
                         *, lam, margin, n_valid, tile_n, ignore_index):
    i = pl.program_id(0)

    @pl.when(i == 0)
    def _init():
        acc_ref[0] = 0.0   # running sum of (lse - target_logit)
        acc_ref[1] = 0.0   # running count of counted tokens

    # ---------- cross-entropy partial sum over this token tile ----------
    logits = logits_ref[...].astype(jnp.float32)                  # (tile_n, V)
    tgt = tgt_ref[...]                                            # (tile_n, 1)

    row = jax.lax.broadcasted_iota(jnp.int32, (tile_n, 1), 0) + i * tile_n
    valid = jnp.logical_and(row < n_valid, tgt != ignore_index)   # mask ragged
    validf = valid.astype(jnp.float32)                            # tail + pads

    col = jax.lax.broadcasted_iota(jnp.int32, logits.shape, 1)
    # Fused sweep over the raw tile: row-max and target-logit gather.
    m = jnp.max(logits, axis=-1, keepdims=True)                   # (tile_n, 1)
    tgt_logit = jnp.sum(jnp.where(col == tgt, logits, 0.0),
                        axis=-1, keepdims=True)                   # (tile_n, 1)
    lse = jnp.log(jnp.sum(jnp.exp(logits - m), axis=-1, keepdims=True)) + m

    acc_ref[0] += jnp.sum((lse - tgt_logit) * validf)
    acc_ref[1] += jnp.sum(validf)

    # ---------- last tile: triplet loss (once) + finalize ----------
    @pl.when(i == pl.num_programs(0) - 1)
    def _finalize():
        a = anc_ref[...].astype(jnp.float32)                      # (B, H)
        p = pos_ref[...].astype(jnp.float32)
        n = neg_ref[...].astype(jnp.float32)
        d_ap = jnp.sqrt(jnp.sum((a - p) ** 2, axis=-1, keepdims=True) + 1e-12)
        d_an = jnp.sqrt(jnp.sum((a - n) ** 2, axis=-1, keepdims=True) + 1e-12)
        trip = jnp.mean(jnp.maximum(d_ap - d_an + margin, 0.0))
        ce = acc_ref[0] / jnp.maximum(acc_ref[1], 1.0)
        out_ref[0, 0] = (1.0 - lam) * ce + lam * trip


def _pick_tile_n(n_pad, vocab, itemsize):
    # ~4 MiB of f32 compute temporaries per tile keeps 2 pipeline buffers well
    # under the smallest scoped-VMEM defaults (v5e 16 MiB, v7x 64 MiB total).
    budget = 4 * 1024 * 1024
    t = budget // max(vocab * 4, 1)
    t = max(8, min(512, (t // 8) * 8))
    return int(min(t, n_pad))


def siamese_loss(logits, target, anchor, positive, negative,
                 lam=0.7, margin=1.0, ignore_index=-100, tile_n=None):
    """logits: (B, S, V); target: (B, S) int; anchor/positive/negative: (B, H)."""
    B, S, V = logits.shape
    H = anchor.shape[-1]
    N = B * S
    logits2d = logits.reshape(N, V)                 # keep native dtype (bf16 ok)
    tgt2d = target.reshape(N, 1).astype(jnp.int32)

    n_pad8 = ((N + 7) // 8) * 8
    if tile_n is None:
        tile_n = _pick_tile_n(n_pad8, V, logits2d.dtype.itemsize)
    tile_n = max(8, (int(tile_n) // 8) * 8)
    grid_n = pl.cdiv(N, tile_n)
    n_pad = grid_n * tile_n
    if n_pad != N:                                   # pad ragged tail (masked)
        logits2d = jnp.pad(logits2d, ((0, n_pad - N), (0, 0)))
        tgt2d = jnp.pad(tgt2d, ((0, n_pad - N), (0, 0)))

    kernel = functools.partial(
        _siamese_loss_kernel, lam=float(lam), margin=float(margin),
        n_valid=N, tile_n=tile_n, ignore_index=int(ignore_index))

    cost = pl.CostEstimate(
        flops=int(6 * N * V + 6 * B * H),
        transcendentals=int(N * V),
        bytes_accessed=int(N * V * logits2d.dtype.itemsize + N * 4
                           + 3 * B * H * anchor.dtype.itemsize + 4))

    out = pl.pallas_call(
        kernel,
        out_shape=jax.ShapeDtypeStruct((1, 1), jnp.float32),
        grid_spec=pltpu.PrefetchScalarGridSpec(
            num_scalar_prefetch=0,
            grid=(grid_n,),
            in_specs=[
                pl.BlockSpec((tile_n, V), lambda i: (i, 0)),      # logits tile
                pl.BlockSpec((tile_n, 1), lambda i: (i, 0)),      # target tile
                pl.BlockSpec((B, H), lambda i: (0, 0)),           # anchor (resident)
                pl.BlockSpec((B, H), lambda i: (0, 0)),           # positive
                pl.BlockSpec((B, H), lambda i: (0, 0)),           # negative
            ],
            out_specs=pl.BlockSpec((1, 1), lambda i: (0, 0),
                                   memory_space=pltpu.MemorySpace.SMEM),
            scratch_shapes=[pltpu.SMEM((2,), jnp.float32)],
        ),
        compiler_params=pltpu.CompilerParams(
            dimension_semantics=("arbitrary",),          # accumulator axis
            vmem_limit_bytes=32 * 1024 * 1024),
        cost_estimate=cost,
    )(logits2d, tgt2d, anchor, positive, negative)
    return out[0, 0]


def _reference(logits, target, anchor, positive, negative, lam=0.7, margin=1.0):
    _, _, V = logits.shape
    lg = logits.reshape(-1, V).astype(jnp.float32)
    tg = target.reshape(-1)
    lse = jax.nn.logsumexp(lg, axis=-1)
    tgt_logit = jnp.take_along_axis(lg, tg[:, None], axis=-1)[:, 0]
    ce = jnp.mean(lse - tgt_logit)
    d_ap = jnp.sqrt(jnp.sum((anchor - positive) ** 2, axis=-1) + 1e-12)
    d_an = jnp.sqrt(jnp.sum((anchor - negative) ** 2, axis=-1) + 1e-12)
    trip = jnp.mean(jnp.maximum(d_ap - d_an + margin, 0.0))
    return (1.0 - lam) * ce + lam * trip


if __name__ == "__main__":
    key = jax.random.PRNGKey(0)
    kl, kt, ka, kp, kn = jax.random.split(key, 5)

    B, S, V, H = 2, 8, 128, 32
    logits = jax.random.normal(kl, (B, S, V), dtype=jnp.float32)
    target = jax.random.randint(kt, (B, S), 0, V, dtype=jnp.int32)
    anchor = jax.random.normal(ka, (B, H), dtype=jnp.float32)
    positive = anchor + 0.1 * jax.random.normal(kp, (B, H), dtype=jnp.float32)
    negative = jax.random.normal(kn, (B, H), dtype=jnp.float32)

    # Multi-tile path (grid of 2) exercising the SMEM accumulator pipeline.
    loss = siamese_loss(logits, target, anchor, positive, negative, tile_n=8)
    jax.block_until_ready(loss)
    ref = _reference(logits, target, anchor, positive, negative)
    assert jnp.allclose(loss, ref, atol=1e-4, rtol=1e-4), (loss, ref)

    # Ragged tail (N=10 padded to 16) exercising the valid-row mask.
    S2 = 5
    loss2 = siamese_loss(logits[:, :S2], target[:, :S2], anchor, positive,
                         negative, tile_n=8)
    jax.block_until_ready(loss2)
    ref2 = _reference(logits[:, :S2], target[:, :S2], anchor, positive, negative)
    assert jnp.allclose(loss2, ref2, atol=1e-4, rtol=1e-4), (loss2, ref2)

    print("KERNEL_OK")
</pallas_src>

<mosaic_0001>
module attributes {stable_mosaic.version = 11 : i64} {
  func.func @_siamese_loss_kernel(%arg0: i32, %arg1: memref<8x128xf32, #tpu.memory_space<vmem>>, %arg2: memref<8x1xi32, #tpu.memory_space<vmem>>, %arg3: memref<2x32xf32, #tpu.memory_space<vmem>>, %arg4: memref<2x32xf32, #tpu.memory_space<vmem>>, %arg5: memref<2x32xf32, #tpu.memory_space<vmem>>, %arg6: memref<1x1xf32, #tpu.memory_space<smem>>, %arg7: memref<2xf32, #tpu.memory_space<smem>>) attributes {dimension_semantics = [#tpu.dimension_semantics<arbitrary>], iteration_bounds = array<i64: 2>, scalar_prefetch = 0 : i64, scratch_operands = 1 : i64, tpu.core_type = #tpu.core_type<tc>, window_params = [{transform_indices = @transform_0, window_bounds = array<i64: 8, 128>}, {transform_indices = @transform_1, window_bounds = array<i64: 8, 1>}, {pipeline_mode = #tpu.pipeline_mode<synchronous>, transform_indices = @transform_2, window_bounds = array<i64: 2, 32>}, {pipeline_mode = #tpu.pipeline_mode<synchronous>, transform_indices = @transform_3, window_bounds = array<i64: 2, 32>}, {pipeline_mode = #tpu.pipeline_mode<synchronous>, transform_indices = @transform_4, window_bounds = array<i64: 2, 32>}, {transform_indices = @transform_5, window_bounds = array<i64: 1, 1>}]} {
    %c0_i32 = arith.constant 0 : i32
    %0 = arith.cmpi eq, %arg0, %c0_i32 : i32
    %1 = arith.extui %0 : i1 to i32
    %c0_i32_0 = arith.constant 0 : i32
    %2 = arith.cmpi ne, %1, %c0_i32_0 : i32
    scf.if %2 {
      %cst_13 = arith.constant 0.000000e+00 : f32
      %c0_14 = arith.constant 0 : index
      %51 = memref.load %arg7[%c0_14] : memref<2xf32, #tpu.memory_space<smem>>
      memref.store %cst_13, %arg7[%c0_14] : memref<2xf32, #tpu.memory_space<smem>>
      %cst_15 = arith.constant 0.000000e+00 : f32
      %c1_16 = arith.constant 1 : index
      %52 = memref.load %arg7[%c1_16] : memref<2xf32, #tpu.memory_space<smem>>
      memref.store %cst_15, %arg7[%c1_16] : memref<2xf32, #tpu.memory_space<smem>>
    } else {
    }
    %c0 = arith.constant 0 : index
    %c0_1 = arith.constant 0 : index
    %3 = vector.load %arg1[%c0, %c0_1] : memref<8x128xf32, #tpu.memory_space<vmem>>, vector<8x128xf32>
    %c0_2 = arith.constant 0 : index
    %c0_3 = arith.constant 0 : index
    %4 = vector.load %arg2[%c0_2, %c0_3] : memref<8x1xi32, #tpu.memory_space<vmem>>, vector<8x1xi32>
    %5 = tpu.iota {dimensions = array<i32: 0>} : vector<8x1xi32>
    %c8_i32 = arith.constant 8 : i32
    %6 = arith.muli %arg0, %c8_i32 : i32
    %7 = vector.broadcast %6 : i32 to vector<8x1xi32>
    %8 = arith.addi %5, %7 : vector<8x1xi32>
    %c16_i32 = arith.constant 16 : i32
    %9 = vector.broadcast %c16_i32 : i32 to vector<8x1xi32>
    %10 = arith.cmpi slt, %8, %9 : vector<8x1xi32>
    %c-100_i32 = arith.constant -100 : i32
    %11 = vector.broadcast %c-100_i32 : i32 to vector<8x1xi32>
    %12 = arith.cmpi ne, %4, %11 : vector<8x1xi32>
    %13 = arith.andi %10, %12 : vector<8x1xi1>
    %14 = arith.extui %13 : vector<8x1xi1> to vector<8x1xi32>
    %15 = arith.sitofp %14 : vector<8x1xi32> to vector<8x1xf32>
    %16 = tpu.iota {dimensions = array<i32: 1>} : vector<8x128xi32>
    %cst = arith.constant dense<0xFF800000> : vector<8xf32>
    %17 = vector.multi_reduction <maximumf>, %3, %cst [1] : vector<8x128xf32> to vector<8xf32>
    %18 = vector.shape_cast %17 : vector<8xf32> to vector<8x1xf32>
    %19 = vector.broadcast %4 : vector<8x1xi32> to vector<8x128xi32>
    %20 = arith.cmpi eq, %16, %19 : vector<8x128xi32>
    %cst_4 = arith.constant 0.000000e+00 : f32
    %21 = vector.broadcast %cst_4 : f32 to vector<8x128xf32>
    %22 = arith.select %20, %3, %21 : vector<8x128xi1>, vector<8x128xf32>
    %cst_5 = arith.constant dense<0.000000e+00> : vector<8xf32>
    %23 = vector.multi_reduction <add>, %22, %cst_5 [1] : vector<8x128xf32> to vector<8xf32>
    %24 = vector.shape_cast %23 : vector<8xf32> to vector<8x1xf32>
    %25 = vector.broadcast %18 : vector<8x1xf32> to vector<8x128xf32>
    %26 = arith.subf %3, %25 : vector<8x128xf32>
    %27 = math.exp %26 : vector<8x128xf32>
    %cst_6 = arith.constant dense<0.000000e+00> : vector<8xf32>
    %28 = vector.multi_reduction <add>, %27, %cst_6 [1] : vector<8x128xf32> to vector<8xf32>
    %29 = vector.shape_cast %28 : vector<8xf32> to vector<8x1xf32>
    %30 = math.log %29 : vector<8x1xf32>
    %31 = arith.addf %30, %18 : vector<8x1xf32>
    %c0_7 = arith.constant 0 : index
    %32 = memref.load %arg7[%c0_7] : memref<2xf32, #tpu.memory_space<smem>>
    %33 = arith.subf %31, %24 : vector<8x1xf32>
    %34 = arith.mulf %33, %15 : vector<8x1xf32>
    %35 = vector.shape_cast %34 : vector<8x1xf32> to vector<1x8x1xf32>
    %cst_8 = arith.constant dense<0.000000e+00> : vector<1xf32>
    %36 = vector.multi_reduction <add>, %35, %cst_8 [1, 2] : vector<1x8x1xf32> to vector<1xf32>
    %37 = vector.shape_cast %36 : vector<1xf32> to vector<1x1x1xf32>
    %38 = vector.extract %37[0, 0, 0] : f32 from vector<1x1x1xf32>
    %39 = arith.addf %32, %38 : f32
    %c0_9 = arith.constant 0 : index
    %40 = memref.load %arg7[%c0_9] : memref<2xf32, #tpu.memory_space<smem>>
    memref.store %39, %arg7[%c0_9] : memref<2xf32, #tpu.memory_space<smem>>
    %c1 = arith.constant 1 : index
    %41 = memref.load %arg7[%c1] : memref<2xf32, #tpu.memory_space<smem>>
    %42 = vector.shape_cast %15 : vector<8x1xf32> to vector<1x8x1xf32>
    %cst_10 = arith.constant dense<0.000000e+00> : vector<1xf32>
    %43 = vector.multi_reduction <add>, %42, %cst_10 [1, 2] : vector<1x8x1xf32> to vector<1xf32>
    %44 = vector.shape_cast %43 : vector<1xf32> to vector<1x1x1xf32>
    %45 = vector.extract %44[0, 0, 0] : f32 from vector<1x1x1xf32>
    %46 = arith.addf %41, %45 : f32
    %c1_11 = arith.constant 1 : index
    %47 = memref.load %arg7[%c1_11] : memref<2xf32, #tpu.memory_space<smem>>
    memref.store %46, %arg7[%c1_11] : memref<2xf32, #tpu.memory_space<smem>>
    %c1_i32 = arith.constant 1 : i32
    %48 = arith.cmpi eq, %arg0, %c1_i32 : i32
    %49 = arith.extui %48 : i1 to i32
    %c0_i32_12 = arith.constant 0 : i32
    %50 = arith.cmpi ne, %49, %c0_i32_12 : i32
    scf.if %50 {
      %c0_13 = arith.constant 0 : index
      %c0_14 = arith.constant 0 : index
      %51 = vector.load %arg3[%c0_13, %c0_14] : memref<2x32xf32, #tpu.memory_space<vmem>>, vector<2x32xf32>
      %c0_15 = arith.constant 0 : index
      %c0_16 = arith.constant 0 : index
      %52 = vector.load %arg4[%c0_15, %c0_16] : memref<2x32xf32, #tpu.memory_space<vmem>>, vector<2x32xf32>
      %c0_17 = arith.constant 0 : index
      %c0_18 = arith.constant 0 : index
      %53 = vector.load %arg5[%c0_17, %c0_18] : memref<2x32xf32, #tpu.memory_space<vmem>>, vector<2x32xf32>
      %54 = arith.subf %51, %52 : vector<2x32xf32>
      %55 = arith.mulf %54, %54 : vector<2x32xf32>
      %cst_19 = arith.constant dense<0.000000e+00> : vector<2xf32>
      %56 = vector.multi_reduction <add>, %55, %cst_19 [1] : vector<2x32xf32> to vector<2xf32>
      %57 = vector.shape_cast %56 : vector<2xf32> to vector<2x1xf32>
      %cst_20 = arith.constant 9.99999996E-13 : f32
      %58 = vector.broadcast %cst_20 : f32 to vector<2x1xf32>
      %59 = arith.addf %57, %58 : vector<2x1xf32>
      %60 = math.sqrt %59 : vector<2x1xf32>
      %61 = arith.subf %51, %53 : vector<2x32xf32>
      %62 = arith.mulf %61, %61 : vector<2x32xf32>
      %cst_21 = arith.constant dense<0.000000e+00> : vector<2xf32>
      %63 = vector.multi_reduction <add>, %62, %cst_21 [1] : vector<2x32xf32> to vector<2xf32>
      %64 = vector.shape_cast %63 : vector<2xf32> to vector<2x1xf32>
      %cst_22 = arith.constant 9.99999996E-13 : f32
      %65 = vector.broadcast %cst_22 : f32 to vector<2x1xf32>
      %66 = arith.addf %64, %65 : vector<2x1xf32>
      %67 = math.sqrt %66 : vector<2x1xf32>
      %68 = arith.subf %60, %67 : vector<2x1xf32>
      %cst_23 = arith.constant 1.000000e+00 : f32
      %69 = vector.broadcast %cst_23 : f32 to vector<2x1xf32>
      %70 = arith.addf %68, %69 : vector<2x1xf32>
      %cst_24 = arith.constant 0.000000e+00 : f32
      %71 = vector.broadcast %cst_24 : f32 to vector<2x1xf32>
      %72 = arith.maximumf %70, %71 : vector<2x1xf32>
      %73 = vector.shape_cast %72 : vector<2x1xf32> to vector<1x2x1xf32>
      %cst_25 = arith.constant dense<0.000000e+00> : vector<1xf32>
      %74 = vector.multi_reduction <add>, %73, %cst_25 [1, 2] : vector<1x2x1xf32> to vector<1xf32>
      %75 = vector.shape_cast %74 : vector<1xf32> to vector<1x1x1xf32>
      %76 = vector.extract %75[0, 0, 0] : f32 from vector<1x1x1xf32>
      %cst_26 = arith.constant 2.000000e+00 : f32
      %77 = arith.divf %76, %cst_26 : f32
      %c0_27 = arith.constant 0 : index
      %78 = memref.load %arg7[%c0_27] : memref<2xf32, #tpu.memory_space<smem>>
      %c1_28 = arith.constant 1 : index
      %79 = memref.load %arg7[%c1_28] : memref<2xf32, #tpu.memory_space<smem>>
      %cst_29 = arith.constant 1.000000e+00 : f32
      %80 = arith.maximumf %79, %cst_29 : f32
      %81 = arith.divf %78, %80 : f32
      %cst_30 = arith.constant 3.000000e-01 : f32
      %82 = arith.mulf %cst_30, %81 : f32
      %cst_31 = arith.constant 0.699999988 : f32
      %83 = arith.mulf %cst_31, %77 : f32
      %84 = arith.addf %82, %83 : f32
      %c0_32 = arith.constant 0 : index
      %c0_33 = arith.constant 0 : index
      %85 = memref.load %arg6[%c0_32, %c0_33] : memref<1x1xf32, #tpu.memory_space<smem>>
      memref.store %84, %arg6[%c0_32, %c0_33] : memref<1x1xf32, #tpu.memory_space<smem>>
    } else {
    }
    return
  }
  func.func @transform_0(%arg0: i32) -> (i32, i32) {
    %c0_i32 = arith.constant 0 : i32
    %c0_i32_0 = arith.constant 0 : i32
    return %arg0, %c0_i32 : i32, i32
  }
  func.func @transform_1(%arg0: i32) -> (i32, i32) {
    %c0_i32 = arith.constant 0 : i32
    %c0_i32_0 = arith.constant 0 : i32
    return %arg0, %c0_i32 : i32, i32
  }
  func.func @transform_2(%arg0: i32) -> (i32, i32) {
    %c0_i32 = arith.constant 0 : i32
    %c0_i32_0 = arith.constant 0 : i32
    %c0_i32_1 = arith.constant 0 : i32
    return %c0_i32, %c0_i32_0 : i32, i32
  }
  func.func @transform_3(%arg0: i32) -> (i32, i32) {
    %c0_i32 = arith.constant 0 : i32
    %c0_i32_0 = arith.constant 0 : i32
    %c0_i32_1 = arith.constant 0 : i32
    return %c0_i32, %c0_i32_0 : i32, i32
  }
  func.func @transform_4(%arg0: i32) -> (i32, i32) {
    %c0_i32 = arith.constant 0 : i32
    %c0_i32_0 = arith.constant 0 : i32
    %c0_i32_1 = arith.constant 0 : i32
    return %c0_i32, %c0_i32_0 : i32, i32
  }
  func.func @transform_5(%arg0: i32) -> (i32, i32) {
    %c0_i32 = arith.constant 0 : i32
    %c0_i32_0 = arith.constant 0 : i32
    %c0_i32_1 = arith.constant 0 : i32
    return %c0_i32, %c0_i32_0 : i32, i32
  }
}

</mosaic_0001>

<llo_original>
// kernel: tpu_custom_call.1
$region0: #{tpu_custom_call.1}
  #allocation0 [shape = 'u32[]', space=smem, size = 0x4, offset = 0x4, fixed_abs, tag = 'smem constant byte address 0x4 - core index']
  #allocation1 [shape = 'u32[144,128]{1,0:T(1,128)}', space=vmem, size = 0x12000, scoped, tag = 'internal scratch']
  #allocation2 [shape = 'f32[2]{0:T(128)}', space=smem, size = 0x200, scoped, tag = 'scratch operand']
  %s0 = inlined_call_operand.vmem [shape: f32[16,128], index: 0, kind: input, shape index: {}]
  %s1 = inlined_call_operand.vmem [shape: s32[16,1], index: 1, kind: input, shape index: {}]
  %s2 = inlined_call_operand.vmem [shape: f32[2,32], index: 2, kind: input, shape index: {}]
  %s3 = inlined_call_operand.vmem [shape: f32[2,32], index: 3, kind: input, shape index: {}]
  %s4 = inlined_call_operand.vmem [shape: f32[2,32], index: 4, kind: input, shape index: {}]
  %s5 = inlined_call_operand.hbm [shape: f32[1,1], index: 5, kind: output, shape index: {}]
  %s6 = sld [smem:[#allocation0]]
  $region61: #{tpu_custom_call.1} parent=0
    _
  %s8 = ssub.s32 1, %s6
  %s9 = scalar_select 0, %s8, %s6
  $region1: #{tpu_custom_call.1} parent=0
    #allocation3 [shape = 'u8[512]{0}', space=smem, size = 0x200, scoped, tag = 'output window, operand 0, single buffered']
    #allocation4 [shape = 's32[2]{0}', space=sflag, size = 0x8, scoped, tag = 'scoped memory for tpu_custom_call.1']
    %10 = vsyncpa [#allocation4], 0
    loop: start=0, step=1, limit=4
    $region2: #{tpu_custom_call.1} parent=1 // loop_pre_header
      _
    $region3: #{tpu_custom_call.1} parent=1 // loop_header
      %s12 = sphi 0, %s16
      %p13 = scmp.ge.s32.totalorder %s12, 4
      %s22 = sphi 0, %s24
      %s25 = sphi 0, %s22
      %s26 = sphi 0, %s25
      %s42 = sphi 0, %s26
      %s48 = sphi 0, %s50
      %s51 = sphi 0, %s48
      %s52 = sphi 0, %s51
      %s68 = sphi 0, %s52
      %s72 = sphi 0, %s72
      %s74 = sphi 0, %s72
      %s75 = sphi 0, %s74
      %s89 = sphi 0, %s75
      %s93 = sphi 0, %s93
      %s95 = sphi 0, %s93
      %s96 = sphi 0, %s95
      %s110 = sphi 0, %s96
      %s114 = sphi 0, %s114
      %s116 = sphi 0, %s114
      %s117 = sphi 0, %s116
      %s131 = sphi 0, %s117
      %s135 = sphi 0, %s135
      %s137 = sphi 0, %s135
      %s138 = sphi 0, %s137
      %s152 = sphi 0, %s138
    $region4: #{tpu_custom_call.1} parent=1 // loop_header_branch
      %15 = sbr.rel (%p13) target = $region8
    $region5: #{tpu_custom_call.1} parent=1 // loop_body
      %s17 = ssub.s32 %s12, 1
      %s18 = ssub.s32 %s12, 2
      %s19 = sadd.s32 %s12, 1
      %s20 = ssub.s32 %s12, %s19
      %p21 = scmp.eq.s32.totalorder %s20, 0
      %s23 = sadd.s32 %s22, 1
      %s24 = scalar_select %p21, %s22, %s23
      %p27 = pneg %p21
      %p28 = scmp.eq.s32.totalorder %s12, 1
      %p29 = por %p27, %p28
      %p30 = scmp.ne.s32.totalorder %s22, %s25
      %p31 = scmp.eq.s32.totalorder %s12, 0
      %p32 = por %p30, %p31
      %p33 = scmp.ne.s32.totalorder %s22, %s25
      %p34 = scmp.eq.s32.totalorder %s17, 1
      %p35 = por %p33, %p34
      %p36 = scmp.ne.s32.totalorder %s25, %s26
      %p37 = scmp.eq.s32.totalorder %s17, 0
      %p38 = por %p36, %p37
      %p39 = scmp.ne.s32.totalorder %s25, %s26
      %p40 = scmp.eq.s32.totalorder %s18, 1
      %p41 = por %p39, %p40
      %p43 = scmp.ne.s32.totalorder %s26, %s42
      %p44 = scmp.eq.s32.totalorder %s18, 0
      %p45 = por %p43, %p44
      %s46 = ssub.s32 %s12, %s19
      %p47 = scmp.eq.s32.totalorder %s46, 0
      %s49 = sadd.s32 %s48, 1
      %s50 = scalar_select %p47, %s48, %s49
      %p53 = pneg %p47
      %p54 = scmp.eq.s32.totalorder %s12, 1
      %p55 = por %p53, %p54
      %p56 = scmp.ne.s32.totalorder %s48, %s51
      %p57 = scmp.eq.s32.totalorder %s12, 0
      %p58 = por %p56, %p57
      %p59 = scmp.ne.s32.totalorder %s48, %s51
      %p60 = scmp.eq.s32.totalorder %s17, 1
      %p61 = por %p59, %p60
      %p62 = scmp.ne.s32.totalorder %s51, %s52
      %p63 = scmp.eq.s32.totalorder %s17, 0
      %p64 = por %p62, %p63
      %p65 = scmp.ne.s32.totalorder %s51, %s52
      %p66 = scmp.eq.s32.totalorder %s18, 1
      %p67 = por %p65, %p66
      %p69 = scmp.ne.s32.totalorder %s52, %s68
      %p70 = scmp.eq.s32.totalorder %s18, 0
      %p71 = por %p69, %p70
      %s73 = sadd.s32 %s72, 1
      %p76 = scmp.eq.s32.totalorder %s12, 1
      %p77 = scmp.ne.s32.totalorder %s72, %s74
      %p78 = scmp.eq.s32.totalorder %s12, 0
      %p79 = por %p77, %p78
      %p80 = scmp.ne.s32.totalorder %s72, %s74
      %p81 = scmp.eq.s32.totalorder %s17, 1
      %p82 = por %p80, %p81
      %p83 = scmp.ne.s32.totalorder %s74, %s75
      %p84 = scmp.eq.s32.totalorder %s17, 0
      %p85 = por %p83, %p84
      %p86 = scmp.ne.s32.totalorder %s74, %s75
      %p87 = scmp.eq.s32.totalorder %s18, 1
      %p88 = por %p86, %p87
      %p90 = scmp.ne.s32.totalorder %s75, %s89
      %p91 = scmp.eq.s32.totalorder %s18, 0
      %p92 = por %p90, %p91
      %s94 = sadd.s32 %s93, 1
      %p97 = scmp.eq.s32.totalorder %s12, 1
      %p98 = scmp.ne.s32.totalorder %s93, %s95
      %p99 = scmp.eq.s32.totalorder %s12, 0
      %p100 = por %p98, %p99
      %p101 = scmp.ne.s32.totalorder %s93, %s95
      %p102 = scmp.eq.s32.totalorder %s17, 1
      %p103 = por %p101, %p102
      %p104 = scmp.ne.s32.totalorder %s95, %s96
      %p105 = scmp.eq.s32.totalorder %s17, 0
      %p106 = por %p104, %p105
      %p107 = scmp.ne.s32.totalorder %s95, %s96
      %p108 = scmp.eq.s32.totalorder %s18, 1
      %p109 = por %p107, %p108
      %p111 = scmp.ne.s32.totalorder %s96, %s110
      %p112 = scmp.eq.s32.totalorder %s18, 0
      %p113 = por %p111, %p112
      %s115 = sadd.s32 %s114, 1
      %p118 = scmp.eq.s32.totalorder %s12, 1
      %p119 = scmp.ne.s32.totalorder %s114, %s116
      %p120 = scmp.eq.s32.totalorder %s12, 0
      %p121 = por %p119, %p120
      %p122 = scmp.ne.s32.totalorder %s114, %s116
      %p123 = scmp.eq.s32.totalorder %s17, 1
      %p124 = por %p122, %p123
      %p125 = scmp.ne.s32.totalorder %s116, %s117
      %p126 = scmp.eq.s32.totalorder %s17, 0
      %p127 = por %p125, %p126
      %p128 = scmp.ne.s32.totalorder %s116, %s117
      %p129 = scmp.eq.s32.totalorder %s18, 1
      %p130 = por %p128, %p129
      %p132 = scmp.ne.s32.totalorder %s117, %s131
      %p133 = scmp.eq.s32.totalorder %s18, 0
      %p134 = por %p132, %p133
      %s136 = sadd.s32 %s135, 1
      %p139 = scmp.eq.s32.totalorder %s12, 1
      %p140 = scmp.ne.s32.totalorder %s135, %s137
      %p141 = scmp.eq.s32.totalorder %s12, 0
      %p142 = por %p140, %p141
      %p143 = scmp.ne.s32.totalorder %s135, %s137
      %p144 = scmp.eq.s32.totalorder %s17, 1
      %p145 = por %p143, %p144
      %p146 = scmp.ne.s32.totalorder %s137, %s138
      %p147 = scmp.eq.s32.totalorder %s17, 0
      %p148 = por %p146, %p147
      %p149 = scmp.ne.s32.totalorder %s137, %s138
      %p150 = scmp.eq.s32.totalorder %s18, 1
      %p151 = por %p149, %p150
      %p153 = scmp.ne.s32.totalorder %s138, %s152
      %p154 = scmp.eq.s32.totalorder %s18, 0
      %p155 = por %p153, %p154
      %p156 = scmp.le.s32.totalorder 1, %s12
      %p157 = scmp.lt.s32.totalorder %s12, 3
      %p158 = pnand %p156, %p157
      %p159 = pneg %p158
      // Predicated region
      $region9: #{tpu_custom_call.1} parent=5 // pred_check
        _
      $region10: #{tpu_custom_call.1} parent=5 // pred_check_branch
        %161 = sbr.rel (%p158) target = $region12
      $region11: #{tpu_custom_call.1} parent=5 // pred_region
        %s162 = ssub.s32 %s12, 1
        // Predicated region
        $region13: #{tpu_custom_call.1} parent=11 // pred_check
          %p163 = pneg %p85
        $region14: #{tpu_custom_call.1} parent=11 // pred_check_branch
          %165 = sbr.rel (%p163) target = $region16
        $region15: #{tpu_custom_call.1} parent=11 // pred_region
          _
        $region16: #{tpu_custom_call.1} parent=11 // pred_fallthru
          _
        // Predicated region
        $region17: #{tpu_custom_call.1} parent=11 // pred_check
          %p166 = pneg %p106
        $region18: #{tpu_custom_call.1} parent=11 // pred_check_branch
          %168 = sbr.rel (%p166) target = $region20
        $region19: #{tpu_custom_call.1} parent=11 // pred_region
          _
        $region20: #{tpu_custom_call.1} parent=11 // pred_fallthru
          _
        // Predicated region
        $region21: #{tpu_custom_call.1} parent=11 // pred_check
          %p169 = pneg %p127
        $region22: #{tpu_custom_call.1} parent=11 // pred_check_branch
          %171 = sbr.rel (%p169) target = $region24
        $region23: #{tpu_custom_call.1} parent=11 // pred_region
          _
        $region24: #{tpu_custom_call.1} parent=11 // pred_fallthru
          _
      $region12: #{tpu_custom_call.1} parent=5 // pred_fallthru
        _
      %p172 = scmp.lt.s32.totalorder %s12, 2
      // Predicated region
      $region25: #{tpu_custom_call.1} parent=5 // pred_check
        %p173 = pneg %p172
      $region26: #{tpu_custom_call.1} parent=5 // pred_check_branch
        %175 = sbr.rel (%p173) target = $region28
      $region27: #{tpu_custom_call.1} parent=5 // pred_region
        // Predicated region
        $region29: #{tpu_custom_call.1} parent=27 // pred_check
          %p176 = pneg %p32
        $region30: #{tpu_custom_call.1} parent=27 // pred_check_branch
          %178 = sbr.rel (%p176) target = $region32
        $region31: #{tpu_custom_call.1} parent=27 // pred_region
          %p179 = scmp.lt.s32.totalorder %s12, 1
          %s180 = scalar_select %p179, %s12, 1
          %s181 = smul.addr %s180, 8
          %s182 = scalar_lea.vmem %s0, %s181
        $region32: #{tpu_custom_call.1} parent=27 // pred_fallthru
          _
        // Predicated region
        $region33: #{tpu_custom_call.1} parent=27 // pred_check
          %p183 = pneg %p58
        $region34: #{tpu_custom_call.1} parent=27 // pred_check_branch
          %185 = sbr.rel (%p183) target = $region36
        $region35: #{tpu_custom_call.1} parent=27 // pred_region
          %p186 = scmp.lt.s32.totalorder %s12, 1
          %s187 = scalar_select %p186, %s12, 1
          %s188 = smul.addr %s187, 8
          %s189 = scalar_lea.vmem %s1, %s188
        $region36: #{tpu_custom_call.1} parent=27 // pred_fallthru
          _
      $region28: #{tpu_custom_call.1} parent=5 // pred_fallthru
        _
      %p190 = scmp.le.s32.totalorder 1, %s12
      %p191 = scmp.lt.s32.totalorder %s12, 3
      %p192 = pnand %p190, %p191
      %p193 = pneg %p192
      // Predicated region
      $region37: #{tpu_custom_call.1} parent=5 // pred_check
        _
      $region38: #{tpu_custom_call.1} parent=5 // pred_check_branch
        %195 = sbr.rel (%p192) target = $region40
      $region39: #{tpu_custom_call.1} parent=5 // pred_region
        %s196 = ssub.s32 %s12, 1
        %p197 = scmp.lt.s32.totalorder %s17, 1
        %s198 = scalar_select %p197, %s17, 1
        %s199 = smul.addr %s198, 8
        %s200 = scalar_lea.vmem %s0, %s199
        %p201 = pneg %p38
        %p202 = pneg %p35
        %p203 = scmp.lt.s32.totalorder %s17, 1
        %s204 = scalar_select %p203, %s17, 1
        %s205 = smul.addr %s204, 8
        %s206 = scalar_lea.vmem %s1, %s205
        %p207 = pneg %p64
        %p208 = pneg %p61
        %p209 = pneg %p85
        %p210 = pneg %p82
        %p211 = pneg %p106
        %p212 = pneg %p103
        %p213 = pneg %p127
        %p214 = pneg %p124
        %p215 = pneg %p148
        %p216 = pneg %p145
        %p217 = scmp.lt.s32.totalorder %s17, 1
        %s218 = scalar_select %p217, %s17, 1
        %s219 = smul.addr %s218, 8
        %s220 = scalar_lea.vmem %s0, %s219
        %p221 = scmp.lt.s32.totalorder %s17, 1
        %s222 = scalar_select %p221, %s17, 1
        %s223 = smul.addr %s222, 8
        %s224 = scalar_lea.vmem %s1, %s223
        %p225 = scmp.eq.s32.totalorder %s17, 0
        // Predicated region
        $region41: #{tpu_custom_call.1} parent=39 // pred_check
          %p226 = pneg %p225
        $region42: #{tpu_custom_call.1} parent=39 // pred_check_branch
          %228 = sbr.rel (%p226) target = $region44
        $region43: #{tpu_custom_call.1} parent=39 // pred_region
          %s229 = scalar_lea.smem [#allocation2], 0
          %230 = sst [smem:[%s229]] 0.0
          %s231 = scalar_lea.smem [#allocation2], 1
          %232 = sst [smem:[%s231]] 0.0
        $region44: #{tpu_custom_call.1} parent=39 // pred_fallthru
          _
        %v233 = vld [vmem:[%s220] sm:$0xff]
        %v234 = vld [vmem:[%s224] sm:$0xff]
        %v235 = vlaneseq
        %v236 = vshrl.u32 %v235, 7
        %s237 = smul.u32 %s17, 8
        %v238 = vstv %s237
        %v239 = vadd.s32 %v236, %v238
        %vm240 = vcmp.lt.s32.totalorder %v239, 16
        %vm241 = vcmp.ne.s32.totalorder %v234, 4294967196
        %vm242 = vmand %vm240, %vm241
        %v243 = vsel %vm242, 1, 0
        %v244 = vcvt.s32.f32 %v243
        %v245 = vlaneseq
        %v246 = vand.u32 %v245, 127
        %247 = vmax.xlane.f32.xlu0 %v233
        %v248 = vpop.xlane.xlu0 %247
        %249 = vset.pattern.permute.xlu0 0
        %250 = vperm.xlu0 %249, %v234
        %v251 = vpop.permute.xlu0 %250
        %vm252 = vcmp.eq.s32.totalorder %v246, %v251
        %v253 = vsel %vm252, %v233, 0.0
        %254 = vadd.xlane.f32.xlu0 %v253
        %v255 = vpop.xlane.xlu0 %254
        %v256 = vsub.f32 %v233, %v248
        %v257 = vmul.f32 %v256, 1.442695
        %v258 = vpow.pop %v257
        %259 = vadd.xlane.f32.xlu0 %v258
        %v260 = vpop.xlane.xlu0 %259
        %v261 = vlog2.pop %v260
        %v262 = vmul.f32 %v261, 0.6931472
        %v263 = vadd.f32 %v262, %v248
        %s264 = sld [smem:[#allocation2]]
        %v265 = vsub.f32 %v263, %v255
        %v266 = vmul.f32 %v265, %v244
        %vm267 = vcmask 7168
        %v268 = vsel %vm267, %v266, 0.0
        %269 = vadd.xlane.f32.xlu0 %v268
        %v270 = vpop.xlane.xlu0 %269
        %v271 = vrot.slane %v270, 4
        %v272 = vadd.f32 %v270, %v271
        %v273 = vrot.slane %v272, 2
        %v274 = vadd.f32 %v272, %v273
        %v275 = vrot.slane %v274, 1
        %v276 = vadd.f32 %v274, %v275
        %s277 = vtos %v276
        %s278 = sadd.f32 %s264, %s277
        %s279 = scalar_lea.smem [#allocation2], 0
        %280 = sst [smem:[%s279]] %s278
        %s281 = sld [smem:[#allocation2 + $0x1]]
        %v282 = vsel %vm267, %v244, 0.0
        %283 = vadd.xlane.f32.xlu0 %v282
        %v284 = vpop.xlane.xlu0 %283
        %v285 = vrot.slane %v284, 4
        %v286 = vadd.f32 %v284, %v285
        %v287 = vrot.slane %v286, 2
        %v288 = vadd.f32 %v286, %v287
        %v289 = vrot.slane %v288, 1
        %v290 = vadd.f32 %v288, %v289
        %s291 = vtos %v290
        %s292 = sadd.f32 %s281, %s291
        %s293 = scalar_lea.smem [#allocation2], 1
        %294 = sst [smem:[%s293]] %s292
        %p295 = scmp.eq.s32.totalorder %s17, 1
        // Predicated region
        $region45: #{tpu_custom_call.1} parent=39 // pred_check
          %p296 = pneg %p295
        $region46: #{tpu_custom_call.1} parent=39 // pred_check_branch
          %298 = sbr.rel (%p296) target = $region48
        $region47: #{tpu_custom_call.1} parent=39 // pred_region
          %v299 = vld [vmem:[%s2] sm:$0x3]
          %v300 = vld [vmem:[%s3] sm:$0x3]
          %v301 = vld [vmem:[%s4] sm:$0x3]
          %v302 = vsub.f32 %v299, %v300
          %v303 = vmul.f32 %v302, %v302
          %vm304 = vcmask 254976
          %v305 = vsel %vm304, %v303, 0.0
          %306 = vadd.xlane.f32.xlu0 %v305
          %v307 = vpop.xlane.xlu0 %306
          %v308 = vadd.f32 %v307, 1e-12
          %v309 = vrsqrt.pop %v308
          %v310 = vmul.f32 %v308, %v309
          %vm311 = vcmp.eq.f32.partialorder %v308, inf
          %v312 = vsel %vm311, %v308, %v310
          %vm313 = vcmp.eq.f32.partialorder %v308, 0.0
          %v314 = vand.u32 %v308, 2147483648
          %v315 = vsel %vm313, %v314, %v312
          %v316 = vsub.f32 %v299, %v301
          %v317 = vmul.f32 %v316, %v316
          %v318 = vsel %vm304, %v317, 0.0
          %319 = vadd.xlane.f32.xlu0 %v318
          %v320 = vpop.xlane.xlu0 %319
          %v321 = vadd.f32 %v320, 1e-12
          %v322 = vrsqrt.pop %v321
          %v323 = vmul.f32 %v321, %v322
          %vm324 = vcmp.eq.f32.partialorder %v321, inf
          %v325 = vsel %vm324, %v321, %v323
          %vm326 = vcmp.eq.f32.partialorder %v321, 0.0
          %v327 = vand.u32 %v321, 2147483648
          %v328 = vsel %vm326, %v327, %v325
          %v329 = vsub.f32 %v315, %v328
          %v330 = vadd.f32 %v329, 1.0
          %v331 = vmax.f32 %v330, 0.0
          %vm332 = vcmask 1024
          %v333 = vsel %vm332, %v331, 0.0
          %334 = vadd.xlane.f32.xlu0 %v333
          %v335 = vpop.xlane.xlu0 %334
          %v336 = vrot.slane %v335, 4
          %v337 = vadd.f32 %v335, %v336
          %v338 = vrot.slane %v337, 2
          %v339 = vadd.f32 %v337, %v338
          %v340 = vrot.slane %v339, 1
          %v341 = vadd.f32 %v339, %v340
          %s342 = vtos %v341
          %v343 = vrcp.pop 2.0
          %s344 = vtos %v343
          %s345 = smul.f32 %s342, %s344
          %s346 = sld [smem:[#allocation2]]
          %s347 = sld [smem:[#allocation2 + $0x1]]
          %s348 = smax.f32 %s347, 1.0
          %v349 = vstv %s348
          %v350 = vrcp.pop %v349
          %s351 = vtos %v350
          %s352 = smul.f32 %s346, %s351
          %s353 = smul.f32 %s352, 0.3
          %s354 = smul.f32 %s345, 0.7
          %s355 = sadd.f32 %s353, %s354
          %s356 = scalar_lea.smem [#allocation3], 0
          %357 = sst [smem:[%s356]] %s355
        $region48: #{tpu_custom_call.1} parent=39 // pred_fallthru
          _
        // Predicated region
        $region49: #{tpu_custom_call.1} parent=39 // pred_check
          %p358 = pneg %p145
        $region50: #{tpu_custom_call.1} parent=39 // pred_check_branch
          %360 = sbr.rel (%p358) target = $region52
        $region51: #{tpu_custom_call.1} parent=39 // pred_region
          %s362 = ssub.s32 16, 16
          %363 = vsyncadd [#allocation4], %s362
          %366 = dma.smem_to_hbm [#allocation3], 16, %s5, [#allocation4]
        $region52: #{tpu_custom_call.1} parent=39 // pred_fallthru
          _
        // Predicated region
        $region53: #{tpu_custom_call.1} parent=39 // pred_check
          %p367 = pneg %p145
        $region54: #{tpu_custom_call.1} parent=39 // pred_check_branch
          %369 = sbr.rel (%p367) target = $region56
        $region55: #{tpu_custom_call.1} parent=39 // pred_region
          %370 = dma.done [#allocation4], 16
        $region56: #{tpu_custom_call.1} parent=39 // pred_fallthru
          _
        %371 = sfence
      $region40: #{tpu_custom_call.1} parent=5 // pred_fallthru
        _
      %p372 = scmp.le.s32.totalorder 2, %s12
      // Predicated region
      $region57: #{tpu_custom_call.1} parent=5 // pred_check
        %p373 = pneg %p372
      $region58: #{tpu_custom_call.1} parent=5 // pred_check_branch
        %375 = sbr.rel (%p373) target = $region60
      $region59: #{tpu_custom_call.1} parent=5 // pred_region
        %s376 = ssub.s32 %s12, 2
      $region60: #{tpu_custom_call.1} parent=5 // pred_fallthru
        _
    $region6: #{tpu_custom_call.1} parent=1 // loop_footer
      %s16 = sadd.s32 1, %s12
    $region7: #{tpu_custom_call.1} parent=1 // loop_footer_branch
      %11 = sbr.rel target = $region3
    $region8: #{tpu_custom_call.1} parent=1 // loop_exit
      _
    %377 = vsyncpa [#allocation4], 1
    %s378 = scalar_lea.sflag [#allocation4], 1
    %379 = vsyncpa %s378, 1

</llo_original>
